<compile_context>
chip_gen: v5e
topology: v5e:2x2
jax: 0.10.0
libtpu: 0.0.40
codegen_flags: <defaults>
</compile_context>

<pallas_src>
import functools

import jax
import jax.numpy as jnp
from jax.experimental import pallas as pl
from jax.experimental.pallas import tpu as pltpu


def rnn_kernel(x_ref,      # (T*B, D)  rows grouped by timestep: row = t*B + b
               wih0_ref,   # (D, H)    layer-0 input weights (transposed)
               b0_ref,     # (1, H)    b_ih0 + b_hh0
               whh0_ref,   # (H, H)    layer-0 recurrent weights (transposed)
               wih1_ref,   # (H, H)    layer-1 input weights (transposed)
               whh1_ref,   # (H, H)    layer-1 recurrent weights (transposed)
               b1_ref,     # (1, H)    b_ih1 + b_hh1
               wfc_ref,    # (H, Op)   final FC weights (transposed, lane-padded)
               bfc_ref,    # (1, Op)
               out_ref,    # (B, Op)
               *, seq_len, batch):
    H = whh0_ref.shape[0]

    # Hoisted, timestep-independent layer-0 input projection with the layer-0 bias folded
    # in: one MXU call + one VPU add for ALL timesteps, entirely off the serial chain.
    xp = (jnp.dot(x_ref[...], wih0_ref[...],
                  preferred_element_type=jnp.float32)
          + b0_ref[...])                                       # (T*B, H)

    h0 = jnp.zeros((batch, H), jnp.float32)
    h1 = jnp.zeros((batch, H), jnp.float32)

    # seq_len is a static Python int -> fully unrolled.  h0(t) depends only on h0(t-1),
    # and h1 never feeds back into h0, so layer-1 of step t overlaps layer-0 of step t+1.
    for t in range(seq_len):
        xp_t = xp[t * batch:(t + 1) * batch, :]                # (B, H), static slice
        # Layer 0 (critical path): h0' = tanh(xp_t + h0 @ Whh0^T)
        h0 = jnp.tanh(xp_t + jnp.dot(h0, whh0_ref[...],
                                     preferred_element_type=jnp.float32))
        # Layer 1 (off the h0 chain): h1' = tanh(h0' @ Wih1^T + h1 @ Whh1^T + b1)
        h1 = jnp.tanh(jnp.dot(h0, wih1_ref[...],
                              preferred_element_type=jnp.float32)
                      + jnp.dot(h1, whh1_ref[...],
                                preferred_element_type=jnp.float32)
                      + b1_ref[...])

    # Final FC on the last timestep's top-layer hidden state (lane-dense 128-wide store).
    out_ref[...] = (jnp.dot(h1, wfc_ref[...],
                            preferred_element_type=jnp.float32) + bfc_ref[...])


@jax.jit
def rnn_forward(x, params):
    """x: (B, T, D) float32. Returns (B, output_size) float32."""
    B, T, D = x.shape
    H = params["whh0"].shape[0]
    O = params["wfc"].shape[0]
    Op = max(128, ((O + 127) // 128) * 128)   # lane-dense output width

    # (B, T, D) -> (T*B, D), rows grouped by timestep (row = t*B + b).
    x_flat = jnp.transpose(x, (1, 0, 2)).reshape(T * B, D)

    # Pre-transpose / pre-sum on the host side; recurrent weights stay at real H=64.
    wih0 = params["wih0"].T                                   # (D, H)
    whh0 = params["whh0"].T                                   # (H, H)
    wih1 = params["wih1"].T                                   # (H, H)
    whh1 = params["whh1"].T                                   # (H, H)
    b0 = (params["bih0"] + params["bhh0"]).reshape(1, H)      # (1, H)
    b1 = (params["bih1"] + params["bhh1"]).reshape(1, H)      # (1, H)
    wfc = jnp.pad(params["wfc"].T, ((0, 0), (0, Op - O)))     # (H, Op)
    bfc = jnp.pad(params["bfc"], (0, Op - O)).reshape(1, Op)  # (1, Op)

    full = lambda shape: pl.BlockSpec(shape, lambda i: tuple(0 for _ in shape))

    kernel = functools.partial(rnn_kernel, seq_len=T, batch=B)

    out = pl.pallas_call(
        kernel,
        out_shape=jax.ShapeDtypeStruct((B, Op), jnp.float32),
        grid=(1,),
        in_specs=[
            full((T * B, D)),                    # whole sequence in VMEM (tiny)
            full((D, H)), full((1, H)),
            full((H, H)), full((H, H)), full((H, H)), full((1, H)),
            full((H, Op)), full((1, Op)),
        ],
        out_specs=full((B, Op)),
        compiler_params=pltpu.CompilerParams(
            dimension_semantics=("arbitrary",),
            vmem_limit_bytes=32 * 1024 * 1024),
    )(x_flat, wih0, b0, whh0, wih1, whh1, b1, wfc, bfc)

    # Strip lane padding of the output.
    return out[:, :O]


def rnn_reference(x, params):
    """Pure-JAX reference matching torch.nn.RNN(tanh, num_layers=2) + Linear."""
    B, T, D = x.shape
    H = params["whh0"].shape[0]

    def step(carry, x_t):
        h0, h1 = carry
        h0n = jnp.tanh(x_t @ params["wih0"].T + params["bih0"]
                       + h0 @ params["whh0"].T + params["bhh0"])
        h1n = jnp.tanh(h0n @ params["wih1"].T + params["bih1"]
                       + h1 @ params["whh1"].T + params["bhh1"])
        return (h0n, h1n), h1n

    h0 = jnp.zeros((B, H), jnp.float32)
    h1 = jnp.zeros((B, H), jnp.float32)
    (_, _), ys = jax.lax.scan(step, (h0, h1), jnp.transpose(x, (1, 0, 2)))
    last = ys[-1]                                      # (B, H)
    return last @ params["wfc"].T + params["bfc"]


def init_params(key, input_size, hidden_size, output_size):
    """Deterministic init mimicking PyTorch's U(-1/sqrt(H), 1/sqrt(H))."""
    ks = jax.random.split(key, 11)
    s = 1.0 / jnp.sqrt(hidden_size)
    u = lambda k, shape: jax.random.uniform(k, shape, jnp.float32, -s, s)
    return {
        "wih0": u(ks[0], (hidden_size, input_size)),
        "whh0": u(ks[1], (hidden_size, hidden_size)),
        "bih0": u(ks[2], (hidden_size,)),
        "bhh0": u(ks[3], (hidden_size,)),
        "wih1": u(ks[4], (hidden_size, hidden_size)),
        "whh1": u(ks[5], (hidden_size, hidden_size)),
        "bih1": u(ks[6], (hidden_size,)),
        "bhh1": u(ks[7], (hidden_size,)),
        "wfc":  u(ks[8], (output_size, hidden_size)),
        "bfc":  u(ks[9], (output_size,)),
    }


if __name__ == "__main__":
    batch, seq, input_size = 2, 8, 16
    hidden_size, output_size = 64, 3

    key = jax.random.PRNGKey(0)
    k_x, k_p = jax.random.split(key)
    x = jax.random.normal(k_x, (batch, seq, input_size), jnp.float32)
    params = init_params(k_p, input_size, hidden_size, output_size)

    out = jax.block_until_ready(rnn_forward(x, params))

    ref = rnn_reference(x, params)
    assert out.shape == (batch, output_size)
    assert jnp.allclose(out, ref, atol=1e-5, rtol=1e-5), (out, ref)

    print("KERNEL_OK")
</pallas_src>

<mosaic_0001>
module attributes {stable_mosaic.version = 11 : i64} {
  func.func @rnn_kernel(%arg0: i32, %arg1: memref<16x16xf32, #tpu.memory_space<vmem>>, %arg2: memref<16x64xf32, #tpu.memory_space<vmem>>, %arg3: memref<1x64xf32, #tpu.memory_space<vmem>>, %arg4: memref<64x64xf32, #tpu.memory_space<vmem>>, %arg5: memref<64x64xf32, #tpu.memory_space<vmem>>, %arg6: memref<64x64xf32, #tpu.memory_space<vmem>>, %arg7: memref<1x64xf32, #tpu.memory_space<vmem>>, %arg8: memref<64x128xf32, #tpu.memory_space<vmem>>, %arg9: memref<1x128xf32, #tpu.memory_space<vmem>>, %arg10: memref<2x128xf32, #tpu.memory_space<vmem>>) attributes {dimension_semantics = [#tpu.dimension_semantics<arbitrary>], iteration_bounds = array<i64: 1>, scalar_prefetch = 0 : i64, scratch_operands = 0 : i64, tpu.core_type = #tpu.core_type<tc>, window_params = [{pipeline_mode = #tpu.pipeline_mode<synchronous>, transform_indices = @transform_0, window_bounds = array<i64: 16, 16>}, {pipeline_mode = #tpu.pipeline_mode<synchronous>, transform_indices = @transform_1, window_bounds = array<i64: 16, 64>}, {pipeline_mode = #tpu.pipeline_mode<synchronous>, transform_indices = @transform_2, window_bounds = array<i64: 1, 64>}, {pipeline_mode = #tpu.pipeline_mode<synchronous>, transform_indices = @transform_3, window_bounds = array<i64: 64, 64>}, {pipeline_mode = #tpu.pipeline_mode<synchronous>, transform_indices = @transform_4, window_bounds = array<i64: 64, 64>}, {pipeline_mode = #tpu.pipeline_mode<synchronous>, transform_indices = @transform_5, window_bounds = array<i64: 64, 64>}, {pipeline_mode = #tpu.pipeline_mode<synchronous>, transform_indices = @transform_6, window_bounds = array<i64: 1, 64>}, {pipeline_mode = #tpu.pipeline_mode<synchronous>, transform_indices = @transform_7, window_bounds = array<i64: 64, 128>}, {pipeline_mode = #tpu.pipeline_mode<synchronous>, transform_indices = @transform_8, window_bounds = array<i64: 1, 128>}, {pipeline_mode = #tpu.pipeline_mode<synchronous>, transform_indices = @transform_9, window_bounds = array<i64: 2, 128>}]} {
    %c0 = arith.constant 0 : index
    %c0_0 = arith.constant 0 : index
    %0 = vector.load %arg1[%c0, %c0_0] : memref<16x16xf32, #tpu.memory_space<vmem>>, vector<16x16xf32>
    %c0_1 = arith.constant 0 : index
    %c0_2 = arith.constant 0 : index
    %1 = vector.load %arg2[%c0_1, %c0_2] : memref<16x64xf32, #tpu.memory_space<vmem>>, vector<16x64xf32>
    %cst = arith.constant dense<0.000000e+00> : vector<16x64xf32>
    %2 = tpu.matmul %0, %1, %cst {dimension_numbers = #tpu.dot_dimension_numbers<[1], [0], [0], [1], [0, 0, 1, 1], [], []>} : vector<16x16xf32>, vector<16x64xf32>, vector<16x64xf32> -> vector<16x64xf32>
    %c0_3 = arith.constant 0 : index
    %c0_4 = arith.constant 0 : index
    %3 = vector.load %arg3[%c0_3, %c0_4] : memref<1x64xf32, #tpu.memory_space<vmem>>, vector<1x64xf32>
    %4 = vector.broadcast %3 : vector<1x64xf32> to vector<16x64xf32>
    %5 = arith.addf %2, %4 : vector<16x64xf32>
    %cst_5 = arith.constant 0.000000e+00 : f32
    %6 = vector.broadcast %cst_5 : f32 to vector<2x64xf32>
    %cst_6 = arith.constant 0.000000e+00 : f32
    %7 = vector.broadcast %cst_6 : f32 to vector<2x64xf32>
    %8 = vector.extract_strided_slice %5 {offsets = [0, 0], sizes = [2, 64], strides = [1, 1]} : vector<16x64xf32> to vector<2x64xf32>
    %c0_7 = arith.constant 0 : index
    %c0_8 = arith.constant 0 : index
    %9 = vector.load %arg4[%c0_7, %c0_8] : memref<64x64xf32, #tpu.memory_space<vmem>>, vector<64x64xf32>
    %cst_9 = arith.constant dense<0.000000e+00> : vector<2x64xf32>
    %10 = tpu.matmul %6, %9, %cst_9 {dimension_numbers = #tpu.dot_dimension_numbers<[1], [0], [0], [1], [0, 0, 1, 1], [], []>} : vector<2x64xf32>, vector<64x64xf32>, vector<2x64xf32> -> vector<2x64xf32>
    %11 = arith.addf %8, %10 : vector<2x64xf32>
    %12 = math.tanh %11 : vector<2x64xf32>
    %c0_10 = arith.constant 0 : index
    %c0_11 = arith.constant 0 : index
    %13 = vector.load %arg5[%c0_10, %c0_11] : memref<64x64xf32, #tpu.memory_space<vmem>>, vector<64x64xf32>
    %cst_12 = arith.constant dense<0.000000e+00> : vector<2x64xf32>
    %14 = tpu.matmul %12, %13, %cst_12 {dimension_numbers = #tpu.dot_dimension_numbers<[1], [0], [0], [1], [0, 0, 1, 1], [], []>} : vector<2x64xf32>, vector<64x64xf32>, vector<2x64xf32> -> vector<2x64xf32>
    %c0_13 = arith.constant 0 : index
    %c0_14 = arith.constant 0 : index
    %15 = vector.load %arg6[%c0_13, %c0_14] : memref<64x64xf32, #tpu.memory_space<vmem>>, vector<64x64xf32>
    %cst_15 = arith.constant dense<0.000000e+00> : vector<2x64xf32>
    %16 = tpu.matmul %7, %15, %cst_15 {dimension_numbers = #tpu.dot_dimension_numbers<[1], [0], [0], [1], [0, 0, 1, 1], [], []>} : vector<2x64xf32>, vector<64x64xf32>, vector<2x64xf32> -> vector<2x64xf32>
    %17 = arith.addf %14, %16 : vector<2x64xf32>
    %c0_16 = arith.constant 0 : index
    %c0_17 = arith.constant 0 : index
    %18 = vector.load %arg7[%c0_16, %c0_17] : memref<1x64xf32, #tpu.memory_space<vmem>>, vector<1x64xf32>
    %19 = vector.broadcast %18 : vector<1x64xf32> to vector<2x64xf32>
    %20 = arith.addf %17, %19 : vector<2x64xf32>
    %21 = math.tanh %20 : vector<2x64xf32>
    %22 = vector.extract_strided_slice %5 {offsets = [2, 0], sizes = [2, 64], strides = [1, 1]} : vector<16x64xf32> to vector<2x64xf32>
    %c0_18 = arith.constant 0 : index
    %c0_19 = arith.constant 0 : index
    %23 = vector.load %arg4[%c0_18, %c0_19] : memref<64x64xf32, #tpu.memory_space<vmem>>, vector<64x64xf32>
    %cst_20 = arith.constant dense<0.000000e+00> : vector<2x64xf32>
    %24 = tpu.matmul %12, %23, %cst_20 {dimension_numbers = #tpu.dot_dimension_numbers<[1], [0], [0], [1], [0, 0, 1, 1], [], []>} : vector<2x64xf32>, vector<64x64xf32>, vector<2x64xf32> -> vector<2x64xf32>
    %25 = arith.addf %22, %24 : vector<2x64xf32>
    %26 = math.tanh %25 : vector<2x64xf32>
    %c0_21 = arith.constant 0 : index
    %c0_22 = arith.constant 0 : index
    %27 = vector.load %arg5[%c0_21, %c0_22] : memref<64x64xf32, #tpu.memory_space<vmem>>, vector<64x64xf32>
    %cst_23 = arith.constant dense<0.000000e+00> : vector<2x64xf32>
    %28 = tpu.matmul %26, %27, %cst_23 {dimension_numbers = #tpu.dot_dimension_numbers<[1], [0], [0], [1], [0, 0, 1, 1], [], []>} : vector<2x64xf32>, vector<64x64xf32>, vector<2x64xf32> -> vector<2x64xf32>
    %c0_24 = arith.constant 0 : index
    %c0_25 = arith.constant 0 : index
    %29 = vector.load %arg6[%c0_24, %c0_25] : memref<64x64xf32, #tpu.memory_space<vmem>>, vector<64x64xf32>
    %cst_26 = arith.constant dense<0.000000e+00> : vector<2x64xf32>
    %30 = tpu.matmul %21, %29, %cst_26 {dimension_numbers = #tpu.dot_dimension_numbers<[1], [0], [0], [1], [0, 0, 1, 1], [], []>} : vector<2x64xf32>, vector<64x64xf32>, vector<2x64xf32> -> vector<2x64xf32>
    %31 = arith.addf %28, %30 : vector<2x64xf32>
    %c0_27 = arith.constant 0 : index
    %c0_28 = arith.constant 0 : index
    %32 = vector.load %arg7[%c0_27, %c0_28] : memref<1x64xf32, #tpu.memory_space<vmem>>, vector<1x64xf32>
    %33 = vector.broadcast %32 : vector<1x64xf32> to vector<2x64xf32>
    %34 = arith.addf %31, %33 : vector<2x64xf32>
    %35 = math.tanh %34 : vector<2x64xf32>
    %36 = vector.extract_strided_slice %5 {offsets = [4, 0], sizes = [2, 64], strides = [1, 1]} : vector<16x64xf32> to vector<2x64xf32>
    %c0_29 = arith.constant 0 : index
    %c0_30 = arith.constant 0 : index
    %37 = vector.load %arg4[%c0_29, %c0_30] : memref<64x64xf32, #tpu.memory_space<vmem>>, vector<64x64xf32>
    %cst_31 = arith.constant dense<0.000000e+00> : vector<2x64xf32>
    %38 = tpu.matmul %26, %37, %cst_31 {dimension_numbers = #tpu.dot_dimension_numbers<[1], [0], [0], [1], [0, 0, 1, 1], [], []>} : vector<2x64xf32>, vector<64x64xf32>, vector<2x64xf32> -> vector<2x64xf32>
    %39 = arith.addf %36, %38 : vector<2x64xf32>
    %40 = math.tanh %39 : vector<2x64xf32>
    %c0_32 = arith.constant 0 : index
    %c0_33 = arith.constant 0 : index
    %41 = vector.load %arg5[%c0_32, %c0_33] : memref<64x64xf32, #tpu.memory_space<vmem>>, vector<64x64xf32>
    %cst_34 = arith.constant dense<0.000000e+00> : vector<2x64xf32>
    %42 = tpu.matmul %40, %41, %cst_34 {dimension_numbers = #tpu.dot_dimension_numbers<[1], [0], [0], [1], [0, 0, 1, 1], [], []>} : vector<2x64xf32>, vector<64x64xf32>, vector<2x64xf32> -> vector<2x64xf32>
    %c0_35 = arith.constant 0 : index
    %c0_36 = arith.constant 0 : index
    %43 = vector.load %arg6[%c0_35, %c0_36] : memref<64x64xf32, #tpu.memory_space<vmem>>, vector<64x64xf32>
    %cst_37 = arith.constant dense<0.000000e+00> : vector<2x64xf32>
    %44 = tpu.matmul %35, %43, %cst_37 {dimension_numbers = #tpu.dot_dimension_numbers<[1], [0], [0], [1], [0, 0, 1, 1], [], []>} : vector<2x64xf32>, vector<64x64xf32>, vector<2x64xf32> -> vector<2x64xf32>
    %45 = arith.addf %42, %44 : vector<2x64xf32>
    %c0_38 = arith.constant 0 : index
    %c0_39 = arith.constant 0 : index
    %46 = vector.load %arg7[%c0_38, %c0_39] : memref<1x64xf32, #tpu.memory_space<vmem>>, vector<1x64xf32>
    %47 = vector.broadcast %46 : vector<1x64xf32> to vector<2x64xf32>
    %48 = arith.addf %45, %47 : vector<2x64xf32>
    %49 = math.tanh %48 : vector<2x64xf32>
    %50 = vector.extract_strided_slice %5 {offsets = [6, 0], sizes = [2, 64], strides = [1, 1]} : vector<16x64xf32> to vector<2x64xf32>
    %c0_40 = arith.constant 0 : index
    %c0_41 = arith.constant 0 : index
    %51 = vector.load %arg4[%c0_40, %c0_41] : memref<64x64xf32, #tpu.memory_space<vmem>>, vector<64x64xf32>
    %cst_42 = arith.constant dense<0.000000e+00> : vector<2x64xf32>
    %52 = tpu.matmul %40, %51, %cst_42 {dimension_numbers = #tpu.dot_dimension_numbers<[1], [0], [0], [1], [0, 0, 1, 1], [], []>} : vector<2x64xf32>, vector<64x64xf32>, vector<2x64xf32> -> vector<2x64xf32>
    %53 = arith.addf %50, %52 : vector<2x64xf32>
    %54 = math.tanh %53 : vector<2x64xf32>
    %c0_43 = arith.constant 0 : index
    %c0_44 = arith.constant 0 : index
    %55 = vector.load %arg5[%c0_43, %c0_44] : memref<64x64xf32, #tpu.memory_space<vmem>>, vector<64x64xf32>
    %cst_45 = arith.constant dense<0.000000e+00> : vector<2x64xf32>
    %56 = tpu.matmul %54, %55, %cst_45 {dimension_numbers = #tpu.dot_dimension_numbers<[1], [0], [0], [1], [0, 0, 1, 1], [], []>} : vector<2x64xf32>, vector<64x64xf32>, vector<2x64xf32> -> vector<2x64xf32>
    %c0_46 = arith.constant 0 : index
    %c0_47 = arith.constant 0 : index
    %57 = vector.load %arg6[%c0_46, %c0_47] : memref<64x64xf32, #tpu.memory_space<vmem>>, vector<64x64xf32>
    %cst_48 = arith.constant dense<0.000000e+00> : vector<2x64xf32>
    %58 = tpu.matmul %49, %57, %cst_48 {dimension_numbers = #tpu.dot_dimension_numbers<[1], [0], [0], [1], [0, 0, 1, 1], [], []>} : vector<2x64xf32>, vector<64x64xf32>, vector<2x64xf32> -> vector<2x64xf32>
    %59 = arith.addf %56, %58 : vector<2x64xf32>
    %c0_49 = arith.constant 0 : index
    %c0_50 = arith.constant 0 : index
    %60 = vector.load %arg7[%c0_49, %c0_50] : memref<1x64xf32, #tpu.memory_space<vmem>>, vector<1x64xf32>
    %61 = vector.broadcast %60 : vector<1x64xf32> to vector<2x64xf32>
    %62 = arith.addf %59, %61 : vector<2x64xf32>
    %63 = math.tanh %62 : vector<2x64xf32>
    %64 = vector.extract_strided_slice %5 {offsets = [8, 0], sizes = [2, 64], strides = [1, 1]} : vector<16x64xf32> to vector<2x64xf32>
    %c0_51 = arith.constant 0 : index
    %c0_52 = arith.constant 0 : index
    %65 = vector.load %arg4[%c0_51, %c0_52] : memref<64x64xf32, #tpu.memory_space<vmem>>, vector<64x64xf32>
    %cst_53 = arith.constant dense<0.000000e+00> : vector<2x64xf32>
    %66 = tpu.matmul %54, %65, %cst_53 {dimension_numbers = #tpu.dot_dimension_numbers<[1], [0], [0], [1], [0, 0, 1, 1], [], []>} : vector<2x64xf32>, vector<64x64xf32>, vector<2x64xf32> -> vector<2x64xf32>
    %67 = arith.addf %64, %66 : vector<2x64xf32>
    %68 = math.tanh %67 : vector<2x64xf32>
    %c0_54 = arith.constant 0 : index
    %c0_55 = arith.constant 0 : index
    %69 = vector.load %arg5[%c0_54, %c0_55] : memref<64x64xf32, #tpu.memory_space<vmem>>, vector<64x64xf32>
    %cst_56 = arith.constant dense<0.000000e+00> : vector<2x64xf32>
    %70 = tpu.matmul %68, %69, %cst_56 {dimension_numbers = #tpu.dot_dimension_numbers<[1], [0], [0], [1], [0, 0, 1, 1], [], []>} : vector<2x64xf32>, vector<64x64xf32>, vector<2x64xf32> -> vector<2x64xf32>
    %c0_57 = arith.constant 0 : index
    %c0_58 = arith.constant 0 : index
    %71 = vector.load %arg6[%c0_57, %c0_58] : memref<64x64xf32, #tpu.memory_space<vmem>>, vector<64x64xf32>
    %cst_59 = arith.constant dense<0.000000e+00> : vector<2x64xf32>
    %72 = tpu.matmul %63, %71, %cst_59 {dimension_numbers = #tpu.dot_dimension_numbers<[1], [0], [0], [1], [0, 0, 1, 1], [], []>} : vector<2x64xf32>, vector<64x64xf32>, vector<2x64xf32> -> vector<2x64xf32>
    %73 = arith.addf %70, %72 : vector<2x64xf32>
    %c0_60 = arith.constant 0 : index
    %c0_61 = arith.constant 0 : index
    %74 = vector.load %arg7[%c0_60, %c0_61] : memref<1x64xf32, #tpu.memory_space<vmem>>, vector<1x64xf32>
    %75 = vector.broadcast %74 : vector<1x64xf32> to vector<2x64xf32>
    %76 = arith.addf %73, %75 : vector<2x64xf32>
    %77 = math.tanh %76 : vector<2x64xf32>
    %78 = vector.extract_strided_slice %5 {offsets = [10, 0], sizes = [2, 64], strides = [1, 1]} : vector<16x64xf32> to vector<2x64xf32>
    %c0_62 = arith.constant 0 : index
    %c0_63 = arith.constant 0 : index
    %79 = vector.load %arg4[%c0_62, %c0_63] : memref<64x64xf32, #tpu.memory_space<vmem>>, vector<64x64xf32>
    %cst_64 = arith.constant dense<0.000000e+00> : vector<2x64xf32>
    %80 = tpu.matmul %68, %79, %cst_64 {dimension_numbers = #tpu.dot_dimension_numbers<[1], [0], [0], [1], [0, 0, 1, 1], [], []>} : vector<2x64xf32>, vector<64x64xf32>, vector<2x64xf32> -> vector<2x64xf32>
    %81 = arith.addf %78, %80 : vector<2x64xf32>
    %82 = math.tanh %81 : vector<2x64xf32>
    %c0_65 = arith.constant 0 : index
    %c0_66 = arith.constant 0 : index
    %83 = vector.load %arg5[%c0_65, %c0_66] : memref<64x64xf32, #tpu.memory_space<vmem>>, vector<64x64xf32>
    %cst_67 = arith.constant dense<0.000000e+00> : vector<2x64xf32>
    %84 = tpu.matmul %82, %83, %cst_67 {dimension_numbers = #tpu.dot_dimension_numbers<[1], [0], [0], [1], [0, 0, 1, 1], [], []>} : vector<2x64xf32>, vector<64x64xf32>, vector<2x64xf32> -> vector<2x64xf32>
    %c0_68 = arith.constant 0 : index
    %c0_69 = arith.constant 0 : index
    %85 = vector.load %arg6[%c0_68, %c0_69] : memref<64x64xf32, #tpu.memory_space<vmem>>, vector<64x64xf32>
    %cst_70 = arith.constant dense<0.000000e+00> : vector<2x64xf32>
    %86 = tpu.matmul %77, %85, %cst_70 {dimension_numbers = #tpu.dot_dimension_numbers<[1], [0], [0], [1], [0, 0, 1, 1], [], []>} : vector<2x64xf32>, vector<64x64xf32>, vector<2x64xf32> -> vector<2x64xf32>
    %87 = arith.addf %84, %86 : vector<2x64xf32>
    %c0_71 = arith.constant 0 : index
    %c0_72 = arith.constant 0 : index
    %88 = vector.load %arg7[%c0_71, %c0_72] : memref<1x64xf32, #tpu.memory_space<vmem>>, vector<1x64xf32>
    %89 = vector.broadcast %88 : vector<1x64xf32> to vector<2x64xf32>
    %90 = arith.addf %87, %89 : vector<2x64xf32>
    %91 = math.tanh %90 : vector<2x64xf32>
    %92 = vector.extract_strided_slice %5 {offsets = [12, 0], sizes = [2, 64], strides = [1, 1]} : vector<16x64xf32> to vector<2x64xf32>
    %c0_73 = arith.constant 0 : index
    %c0_74 = arith.constant 0 : index
    %93 = vector.load %arg4[%c0_73, %c0_74] : memref<64x64xf32, #tpu.memory_space<vmem>>, vector<64x64xf32>
    %cst_75 = arith.constant dense<0.000000e+00> : vector<2x64xf32>
    %94 = tpu.matmul %82, %93, %cst_75 {dimension_numbers = #tpu.dot_dimension_numbers<[1], [0], [0], [1], [0, 0, 1, 1], [], []>} : vector<2x64xf32>, vector<64x64xf32>, vector<2x64xf32> -> vector<2x64xf32>
    %95 = arith.addf %92, %94 : vector<2x64xf32>
    %96 = math.tanh %95 : vector<2x64xf32>
    %c0_76 = arith.constant 0 : index
    %c0_77 = arith.constant 0 : index
    %97 = vector.load %arg5[%c0_76, %c0_77] : memref<64x64xf32, #tpu.memory_space<vmem>>, vector<64x64xf32>
    %cst_78 = arith.constant dense<0.000000e+00> : vector<2x64xf32>
    %98 = tpu.matmul %96, %97, %cst_78 {dimension_numbers = #tpu.dot_dimension_numbers<[1], [0], [0], [1], [0, 0, 1, 1], [], []>} : vector<2x64xf32>, vector<64x64xf32>, vector<2x64xf32> -> vector<2x64xf32>
    %c0_79 = arith.constant 0 : index
    %c0_80 = arith.constant 0 : index
    %99 = vector.load %arg6[%c0_79, %c0_80] : memref<64x64xf32, #tpu.memory_space<vmem>>, vector<64x64xf32>
    %cst_81 = arith.constant dense<0.000000e+00> : vector<2x64xf32>
    %100 = tpu.matmul %91, %99, %cst_81 {dimension_numbers = #tpu.dot_dimension_numbers<[1], [0], [0], [1], [0, 0, 1, 1], [], []>} : vector<2x64xf32>, vector<64x64xf32>, vector<2x64xf32> -> vector<2x64xf32>
    %101 = arith.addf %98, %100 : vector<2x64xf32>
    %c0_82 = arith.constant 0 : index
    %c0_83 = arith.constant 0 : index
    %102 = vector.load %arg7[%c0_82, %c0_83] : memref<1x64xf32, #tpu.memory_space<vmem>>, vector<1x64xf32>
    %103 = vector.broadcast %102 : vector<1x64xf32> to vector<2x64xf32>
    %104 = arith.addf %101, %103 : vector<2x64xf32>
    %105 = math.tanh %104 : vector<2x64xf32>
    %106 = vector.extract_strided_slice %5 {offsets = [14, 0], sizes = [2, 64], strides = [1, 1]} : vector<16x64xf32> to vector<2x64xf32>
    %c0_84 = arith.constant 0 : index
    %c0_85 = arith.constant 0 : index
    %107 = vector.load %arg4[%c0_84, %c0_85] : memref<64x64xf32, #tpu.memory_space<vmem>>, vector<64x64xf32>
    %cst_86 = arith.constant dense<0.000000e+00> : vector<2x64xf32>
    %108 = tpu.matmul %96, %107, %cst_86 {dimension_numbers = #tpu.dot_dimension_numbers<[1], [0], [0], [1], [0, 0, 1, 1], [], []>} : vector<2x64xf32>, vector<64x64xf32>, vector<2x64xf32> -> vector<2x64xf32>
    %109 = arith.addf %106, %108 : vector<2x64xf32>
    %110 = math.tanh %109 : vector<2x64xf32>
    %c0_87 = arith.constant 0 : index
    %c0_88 = arith.constant 0 : index
    %111 = vector.load %arg5[%c0_87, %c0_88] : memref<64x64xf32, #tpu.memory_space<vmem>>, vector<64x64xf32>
    %cst_89 = arith.constant dense<0.000000e+00> : vector<2x64xf32>
    %112 = tpu.matmul %110, %111, %cst_89 {dimension_numbers = #tpu.dot_dimension_numbers<[1], [0], [0], [1], [0, 0, 1, 1], [], []>} : vector<2x64xf32>, vector<64x64xf32>, vector<2x64xf32> -> vector<2x64xf32>
    %c0_90 = arith.constant 0 : index
    %c0_91 = arith.constant 0 : index
    %113 = vector.load %arg6[%c0_90, %c0_91] : memref<64x64xf32, #tpu.memory_space<vmem>>, vector<64x64xf32>
    %cst_92 = arith.constant dense<0.000000e+00> : vector<2x64xf32>
    %114 = tpu.matmul %105, %113, %cst_92 {dimension_numbers = #tpu.dot_dimension_numbers<[1], [0], [0], [1], [0, 0, 1, 1], [], []>} : vector<2x64xf32>, vector<64x64xf32>, vector<2x64xf32> -> vector<2x64xf32>
    %115 = arith.addf %112, %114 : vector<2x64xf32>
    %c0_93 = arith.constant 0 : index
    %c0_94 = arith.constant 0 : index
    %116 = vector.load %arg7[%c0_93, %c0_94] : memref<1x64xf32, #tpu.memory_space<vmem>>, vector<1x64xf32>
    %117 = vector.broadcast %116 : vector<1x64xf32> to vector<2x64xf32>
    %118 = arith.addf %115, %117 : vector<2x64xf32>
    %119 = math.tanh %118 : vector<2x64xf32>
    %c0_95 = arith.constant 0 : index
    %c0_96 = arith.constant 0 : index
    %120 = vector.load %arg8[%c0_95, %c0_96] : memref<64x128xf32, #tpu.memory_space<vmem>>, vector<64x128xf32>
    %cst_97 = arith.constant dense<0.000000e+00> : vector<2x128xf32>
    %121 = tpu.matmul %119, %120, %cst_97 {dimension_numbers = #tpu.dot_dimension_numbers<[1], [0], [0], [1], [0, 0, 1, 1], [], []>} : vector<2x64xf32>, vector<64x128xf32>, vector<2x128xf32> -> vector<2x128xf32>
    %c0_98 = arith.constant 0 : index
    %c0_99 = arith.constant 0 : index
    %122 = vector.load %arg9[%c0_98, %c0_99] : memref<1x128xf32, #tpu.memory_space<vmem>>, vector<1x128xf32>
    %123 = vector.broadcast %122 : vector<1x128xf32> to vector<2x128xf32>
    %124 = arith.addf %121, %123 : vector<2x128xf32>
    %c0_100 = arith.constant 0 : index
    %c0_101 = arith.constant 0 : index
    %125 = vector.load %arg10[%c0_100, %c0_101] : memref<2x128xf32, #tpu.memory_space<vmem>>, vector<2x128xf32>
    tpu.vector_store %arg10[%c0_100, %c0_101], %124 {strides = array<i32>} : memref<2x128xf32, #tpu.memory_space<vmem>>, vector<2x128xf32>,
    return
  }
  func.func @transform_0(%arg0: i32) -> (i32, i32) {
    %c0_i32 = arith.constant 0 : i32
    %c0_i32_0 = arith.constant 0 : i32
    %c0_i32_1 = arith.constant 0 : i32
    return %c0_i32, %c0_i32_0 : i32, i32
  }
  func.func @transform_1(%arg0: i32) -> (i32, i32) {
    %c0_i32 = arith.constant 0 : i32
    %c0_i32_0 = arith.constant 0 : i32
    %c0_i32_1 = arith.constant 0 : i32
    return %c0_i32, %c0_i32_0 : i32, i32
  }
  func.func @transform_2(%arg0: i32) -> (i32, i32) {
    %c0_i32 = arith.constant 0 : i32
    %c0_i32_0 = arith.constant 0 : i32
    %c0_i32_1 = arith.constant 0 : i32
    return %c0_i32, %c0_i32_0 : i32, i32
  }
  func.func @transform_3(%arg0: i32) -> (i32, i32) {
    %c0_i32 = arith.constant 0 : i32
    %c0_i32_0 = arith.constant 0 : i32
    %c0_i32_1 = arith.constant 0 : i32
    return %c0_i32, %c0_i32_0 : i32, i32
  }
  func.func @transform_4(%arg0: i32) -> (i32, i32) {
    %c0_i32 = arith.constant 0 : i32
    %c0_i32_0 = arith.constant 0 : i32
    %c0_i32_1 = arith.constant 0 : i32
    return %c0_i32, %c0_i32_0 : i32, i32
  }
  func.func @transform_5(%arg0: i32) -> (i32, i32) {
    %c0_i32 = arith.constant 0 : i32
    %c0_i32_0 = arith.constant 0 : i32
    %c0_i32_1 = arith.constant 0 : i32
    return %c0_i32, %c0_i32_0 : i32, i32
  }
  func.func @transform_6(%arg0: i32) -> (i32, i32) {
    %c0_i32 = arith.constant 0 : i32
    %c0_i32_0 = arith.constant 0 : i32
    %c0_i32_1 = arith.constant 0 : i32
    return %c0_i32, %c0_i32_0 : i32, i32
  }
  func.func @transform_7(%arg0: i32) -> (i32, i32) {
    %c0_i32 = arith.constant 0 : i32
    %c0_i32_0 = arith.constant 0 : i32
    %c0_i32_1 = arith.constant 0 : i32
    return %c0_i32, %c0_i32_0 : i32, i32
  }
  func.func @transform_8(%arg0: i32) -> (i32, i32) {
    %c0_i32 = arith.constant 0 : i32
    %c0_i32_0 = arith.constant 0 : i32
    %c0_i32_1 = arith.constant 0 : i32
    return %c0_i32, %c0_i32_0 : i32, i32
  }
  func.func @transform_9(%arg0: i32) -> (i32, i32) {
    %c0_i32 = arith.constant 0 : i32
    %c0_i32_0 = arith.constant 0 : i32
    %c0_i32_1 = arith.constant 0 : i32
    return %c0_i32, %c0_i32_0 : i32, i32
  }
}

</mosaic_0001>

<llo_original>
// kernel: rnn_forward.1
$region0: #{rnn_forward.1}
  #allocation0 [shape = 'u32[]', space=smem, size = 0x4, offset = 0x4, fixed_abs, tag = 'smem constant byte address 0x4 - core index']
  #allocation1 [shape = 'u32[72,128]{1,0:T(1,128)}', space=vmem, size = 0x9000, scoped, tag = 'internal scratch']
  %s0 = inlined_call_operand.vmem [shape: f32[16,16], index: 0, kind: input, shape index: {}]
  %s1 = inlined_call_operand.vmem [shape: f32[16,64], index: 1, kind: input, shape index: {}]
  %s2 = inlined_call_operand.vmem [shape: f32[1,64], index: 2, kind: input, shape index: {}]
  %s3 = inlined_call_operand.vmem [shape: f32[64,64], index: 3, kind: input, shape index: {}]
  %s4 = inlined_call_operand.vmem [shape: f32[64,64], index: 4, kind: input, shape index: {}]
  %s5 = inlined_call_operand.vmem [shape: f32[64,64], index: 5, kind: input, shape index: {}]
  %s6 = inlined_call_operand.vmem [shape: f32[1,64], index: 6, kind: input, shape index: {}]
  %s7 = inlined_call_operand.vmem [shape: f32[64,128], index: 7, kind: input, shape index: {}]
  %s8 = inlined_call_operand.vmem [shape: f32[1,128], index: 8, kind: input, shape index: {}]
  %s9 = inlined_call_operand.hbm [shape: f32[2,128], index: 9, kind: output, shape index: {}]
  %s10 = sld [smem:[#allocation0]]
  $region46: #{rnn_forward.1} parent=0
    _
  %s12 = ssub.s32 1, %s10
  %s13 = scalar_select 0, %s12, %s10
  $region1: #{rnn_forward.1} parent=0
    #allocation2 [shape = 'u8[1024]{0}', space=vmem, size = 0x400, scoped, tag = 'output window, operand 0, single buffered']
    #allocation3 [shape = 's32[1]{0}', space=sflag, size = 0x4, scoped, tag = 'scoped memory for rnn_forward.1']
    %14 = vsyncpa [#allocation3], 0
    // Predicated region
    $region2: #{rnn_forward.1} parent=1 // pred_check
      _
    $region3: #{rnn_forward.1} parent=1 // pred_check_branch
      %16 = sbr.rel (0) target = $region5
    $region4: #{rnn_forward.1} parent=1 // pred_region
      _
    $region5: #{rnn_forward.1} parent=1 // pred_fallthru
      _
    // Predicated region
    $region6: #{rnn_forward.1} parent=1 // pred_check
      _
    $region7: #{rnn_forward.1} parent=1 // pred_check_branch
      %18 = sbr.rel (0) target = $region9
    $region8: #{rnn_forward.1} parent=1 // pred_region
      _
    $region9: #{rnn_forward.1} parent=1 // pred_fallthru
      _
    // Predicated region
    $region10: #{rnn_forward.1} parent=1 // pred_check
      _
    $region11: #{rnn_forward.1} parent=1 // pred_check_branch
      %20 = sbr.rel (0) target = $region13
    $region12: #{rnn_forward.1} parent=1 // pred_region
      _
    $region13: #{rnn_forward.1} parent=1 // pred_fallthru
      _
    // Predicated region
    $region14: #{rnn_forward.1} parent=1 // pred_check
      _
    $region15: #{rnn_forward.1} parent=1 // pred_check_branch
      %22 = sbr.rel (0) target = $region17
    $region16: #{rnn_forward.1} parent=1 // pred_region
      _
    $region17: #{rnn_forward.1} parent=1 // pred_fallthru
      _
    // Predicated region
    $region18: #{rnn_forward.1} parent=1 // pred_check
      _
    $region19: #{rnn_forward.1} parent=1 // pred_check_branch
      %24 = sbr.rel (0) target = $region21
    $region20: #{rnn_forward.1} parent=1 // pred_region
      _
    $region21: #{rnn_forward.1} parent=1 // pred_fallthru
      _
    // Predicated region
    $region22: #{rnn_forward.1} parent=1 // pred_check
      _
    $region23: #{rnn_forward.1} parent=1 // pred_check_branch
      %26 = sbr.rel (0) target = $region25
    $region24: #{rnn_forward.1} parent=1 // pred_region
      _
    $region25: #{rnn_forward.1} parent=1 // pred_fallthru
      _
    // Predicated region
    $region26: #{rnn_forward.1} parent=1 // pred_check
      _
    $region27: #{rnn_forward.1} parent=1 // pred_check_branch
      %28 = sbr.rel (0) target = $region29
    $region28: #{rnn_forward.1} parent=1 // pred_region
      _
    $region29: #{rnn_forward.1} parent=1 // pred_fallthru
      _
    // Predicated region
    $region30: #{rnn_forward.1} parent=1 // pred_check
      _
    $region31: #{rnn_forward.1} parent=1 // pred_check_branch
      %30 = sbr.rel (0) target = $region33
    $region32: #{rnn_forward.1} parent=1 // pred_region
      _
    $region33: #{rnn_forward.1} parent=1 // pred_fallthru
      _
    // Predicated region
    $region34: #{rnn_forward.1} parent=1 // pred_check
      _
    $region35: #{rnn_forward.1} parent=1 // pred_check_branch
      %32 = sbr.rel (0) target = $region37
    $region36: #{rnn_forward.1} parent=1 // pred_region
      _
    $region37: #{rnn_forward.1} parent=1 // pred_fallthru
      _
    %v33 = vld [vmem:[%s0] sm:$0xff]
    %v34 = vld [vmem:[%s0 + $0x8] sm:$0xff]
    %v35 = vld [vmem:[%s1] sm:$0xff]
    %v36 = vld [vmem:[%s1 + $0x8] sm:$0xff]
    %v37 = vld [vmem:[%s2] sm:$0x1]
    %v39 = vperm.slane %v37, 0
    %vm41 = vcmask 130048
    %v43 = vsel %vm41, %v33, 0
    %v46 = vsel %vm41, %v34, 0
    %48 = vmatpush.msra.mxu0 0.0
    %49 = vmatpush.msra.mxu0 0.0
    %50 = vmatpush.msra.mxu0 0.0
    %51 = vmatpush.msra.mxu0 0.0
    %52 = vmatpush.msra.mxu0 0.0
    %53 = vmatpush.msra.mxu0 0.0
    %54 = vmatpush.msra.mxu0 0.0
    %55 = vmatpush.msra.mxu0 0.0
    %56 = vmatpush.msra.mxu0 0.0
    %57 = vmatpush.msra.mxu0 0.0
    %58 = vmatpush.msra.mxu0 0.0
    %59 = vmatpush.msra.mxu0 0.0
    %60 = vmatpush.msra.mxu0 0.0
    %61 = vmatpush.msra.mxu0 0.0
    %62 = vmatpush.msra.mxu0 %v36
    %63 = vmatpush.msra.mxu0 %v35
    %64 = vmatmul.f32.gmra.mxu0 %v43
    %v65 = vpop.f32.mrf.mxu0
    %v66 = vadd.f32 %v39, %v65
    %67 = vmatmul.f32.gmra.mxu0 %v46
    %v68 = vpop.f32.mrf.mxu0
    %v69 = vadd.f32 %v39, %v68
    %70 = vdwg.mxu0
    %v71 = vld [vmem:[%s3] sm:$0xff]
    %v72 = vld [vmem:[%s3 + $0x8] sm:$0xff]
    %v73 = vld [vmem:[%s3 + $0x10] sm:$0xff]
    %v74 = vld [vmem:[%s3 + $0x18] sm:$0xff]
    %v75 = vld [vmem:[%s3 + $0x20] sm:$0xff]
    %v76 = vld [vmem:[%s3 + $0x28] sm:$0xff]
    %v77 = vld [vmem:[%s3 + $0x30] sm:$0xff]
    %v78 = vld [vmem:[%s3 + $0x38] sm:$0xff]
    %vm79 = vcmask 523264
    %v81 = vsel %vm79, 0.0, 0
    %83 = vmatpush.msra.mxu0 0.0
    %84 = vmatpush.msra.mxu0 0.0
    %85 = vmatpush.msra.mxu0 0.0
    %86 = vmatpush.msra.mxu0 0.0
    %87 = vmatpush.msra.mxu0 0.0
    %88 = vmatpush.msra.mxu0 0.0
    %89 = vmatpush.msra.mxu0 0.0
    %90 = vmatpush.msra.mxu0 0.0
    %91 = vmatpush.msra.mxu0 %v78
    %92 = vmatpush.msra.mxu0 %v77
    %93 = vmatpush.msra.mxu0 %v76
    %94 = vmatpush.msra.mxu0 %v75
    %95 = vmatpush.msra.mxu0 %v74
    %96 = vmatpush.msra.mxu0 %v73
    %97 = vmatpush.msra.mxu0 %v72
    %98 = vmatpush.msra.mxu0 %v71
    %99 = vmatmul.f32.gmra.mxu0 %v81
    %v100 = vpop.f32.mrf.mxu0
    %v101 = vadd.f32 0.0, %v100
    %102 = vdwg.mxu0
    %v103 = vadd.f32 %v66, %v101
    %v104 = vtanh.pop %v103
    %v105 = vld [vmem:[%s4] sm:$0xff]
    %v106 = vld [vmem:[%s4 + $0x8] sm:$0xff]
    %v107 = vld [vmem:[%s4 + $0x10] sm:$0xff]
    %v108 = vld [vmem:[%s4 + $0x18] sm:$0xff]
    %v109 = vld [vmem:[%s4 + $0x20] sm:$0xff]
    %v110 = vld [vmem:[%s4 + $0x28] sm:$0xff]
    %v111 = vld [vmem:[%s4 + $0x30] sm:$0xff]
    %v112 = vld [vmem:[%s4 + $0x38] sm:$0xff]
    %v113 = vld [vmem:[%s5] sm:$0xff]
    %v114 = vld [vmem:[%s5 + $0x8] sm:$0xff]
    %v115 = vld [vmem:[%s5 + $0x10] sm:$0xff]
    %v116 = vld [vmem:[%s5 + $0x18] sm:$0xff]
    %v117 = vld [vmem:[%s5 + $0x20] sm:$0xff]
    %v118 = vld [vmem:[%s5 + $0x28] sm:$0xff]
    %v119 = vld [vmem:[%s5 + $0x30] sm:$0xff]
    %v120 = vld [vmem:[%s5 + $0x38] sm:$0xff]
    %121 = vmatpush.msra.mxu0 0.0
    %122 = vmatpush.msra.mxu0 0.0
    %123 = vmatpush.msra.mxu0 0.0
    %124 = vmatpush.msra.mxu0 0.0
    %125 = vmatpush.msra.mxu0 0.0
    %126 = vmatpush.msra.mxu0 0.0
    %127 = vmatpush.msra.mxu0 0.0
    %128 = vmatpush.msra.mxu0 0.0
    %129 = vmatpush.msra.mxu0 %v120
    %130 = vmatpush.msra.mxu0 %v119
    %131 = vmatpush.msra.mxu0 %v118
    %132 = vmatpush.msra.mxu0 %v117
    %133 = vmatpush.msra.mxu0 %v116
    %134 = vmatpush.msra.mxu0 %v115
    %135 = vmatpush.msra.mxu0 %v114
    %136 = vmatpush.msra.mxu0 %v113
    %137 = vmatmul.f32.gmra.mxu0 %v81
    %v138 = vpop.f32.mrf.mxu0
    %v139 = vadd.f32 0.0, %v138
    %140 = vdwg.mxu0
    %v142 = vsel %vm79, %v104, 0
    %144 = vmatpush.msra.mxu0 0.0
    %145 = vmatpush.msra.mxu0 0.0
    %146 = vmatpush.msra.mxu0 0.0
    %147 = vmatpush.msra.mxu0 0.0
    %148 = vmatpush.msra.mxu0 0.0
    %149 = vmatpush.msra.mxu0 0.0
    %150 = vmatpush.msra.mxu0 0.0
    %151 = vmatpush.msra.mxu0 0.0
    %152 = vmatpush.msra.mxu0 %v112
    %153 = vmatpush.msra.mxu0 %v111
    %154 = vmatpush.msra.mxu0 %v110
    %155 = vmatpush.msra.mxu0 %v109
    %156 = vmatpush.msra.mxu0 %v108
    %157 = vmatpush.msra.mxu0 %v107
    %158 = vmatpush.msra.mxu0 %v106
    %159 = vmatpush.msra.mxu0 %v105
    %160 = vmatmul.f32.gmra.mxu0 %v142
    %v161 = vpop.f32.mrf.mxu0
    %v162 = vadd.f32 %v139, %v161
    %163 = vdwg.mxu0
    %v164 = vld [vmem:[%s6] sm:$0x1]
    %v166 = vperm.slane %v164, 0
    %v168 = vadd.f32 %v162, %v166
    %v169 = vtanh.pop %v168
    %170 = vmatpush.msra.mxu0 0.0
    %171 = vmatpush.msra.mxu0 0.0
    %172 = vmatpush.msra.mxu0 0.0
    %173 = vmatpush.msra.mxu0 0.0
    %174 = vmatpush.msra.mxu0 0.0
    %175 = vmatpush.msra.mxu0 0.0
    %176 = vmatpush.msra.mxu0 0.0
    %177 = vmatpush.msra.mxu0 0.0
    %178 = vmatpush.msra.mxu0 %v78
    %179 = vmatpush.msra.mxu0 %v77
    %180 = vmatpush.msra.mxu0 %v76
    %181 = vmatpush.msra.mxu0 %v75
    %182 = vmatpush.msra.mxu0 %v74
    %183 = vmatpush.msra.mxu0 %v73
    %184 = vmatpush.msra.mxu0 %v72
    %185 = vmatpush.msra.mxu0 %v71
    %186 = vmatmul.f32.gmra.mxu0 %v142
    %v187 = vpop.f32.mrf.mxu0
    %v188 = vadd.f32 0.0, %v187
    %189 = vdwg.mxu0
    %v191 = vrot.slane %v188, 6
    %v193 = vadd.f32 %v66, %v191
    %v194 = vtanh.pop %v193
    %v196 = vsel %vm79, %v169, 0
    %198 = vmatpush.msra.mxu0 0.0
    %199 = vmatpush.msra.mxu0 0.0
    %200 = vmatpush.msra.mxu0 0.0
    %201 = vmatpush.msra.mxu0 0.0
    %202 = vmatpush.msra.mxu0 0.0
    %203 = vmatpush.msra.mxu0 0.0
    %204 = vmatpush.msra.mxu0 0.0
    %205 = vmatpush.msra.mxu0 0.0
    %206 = vmatpush.msra.mxu0 %v120
    %207 = vmatpush.msra.mxu0 %v119
    %208 = vmatpush.msra.mxu0 %v118
    %209 = vmatpush.msra.mxu0 %v117
    %210 = vmatpush.msra.mxu0 %v116
    %211 = vmatpush.msra.mxu0 %v115
    %212 = vmatpush.msra.mxu0 %v114
    %213 = vmatpush.msra.mxu0 %v113
    %214 = vmatmul.f32.gmra.mxu0 %v196
    %v215 = vpop.f32.mrf.mxu0
    %v216 = vadd.f32 0.0, %v215
    %217 = vdwg.mxu0
    %v219 = vrot.slane %v194, 2
    %v220 = vsel %vm79, %v219, 0
    %222 = vmatpush.msra.mxu0 0.0
    %223 = vmatpush.msra.mxu0 0.0
    %224 = vmatpush.msra.mxu0 0.0
    %225 = vmatpush.msra.mxu0 0.0
    %226 = vmatpush.msra.mxu0 0.0
    %227 = vmatpush.msra.mxu0 0.0
    %228 = vmatpush.msra.mxu0 0.0
    %229 = vmatpush.msra.mxu0 0.0
    %230 = vmatpush.msra.mxu0 %v112
    %231 = vmatpush.msra.mxu0 %v111
    %232 = vmatpush.msra.mxu0 %v110
    %233 = vmatpush.msra.mxu0 %v109
    %234 = vmatpush.msra.mxu0 %v108
    %235 = vmatpush.msra.mxu0 %v107
    %236 = vmatpush.msra.mxu0 %v106
    %237 = vmatpush.msra.mxu0 %v105
    %238 = vmatmul.f32.gmra.mxu0 %v220
    %v239 = vpop.f32.mrf.mxu0
    %v240 = vadd.f32 %v216, %v239
    %241 = vdwg.mxu0
    %v242 = vadd.f32 %v240, %v166
    %v243 = vtanh.pop %v242
    %244 = vmatpush.msra.mxu0 0.0
    %245 = vmatpush.msra.mxu0 0.0
    %246 = vmatpush.msra.mxu0 0.0
    %247 = vmatpush.msra.mxu0 0.0
    %248 = vmatpush.msra.mxu0 0.0
    %249 = vmatpush.msra.mxu0 0.0
    %250 = vmatpush.msra.mxu0 0.0
    %251 = vmatpush.msra.mxu0 0.0
    %252 = vmatpush.msra.mxu0 %v78
    %253 = vmatpush.msra.mxu0 %v77
    %254 = vmatpush.msra.mxu0 %v76
    %255 = vmatpush.msra.mxu0 %v75
    %256 = vmatpush.msra.mxu0 %v74
    %257 = vmatpush.msra.mxu0 %v73
    %258 = vmatpush.msra.mxu0 %v72
    %259 = vmatpush.msra.mxu0 %v71
    %260 = vmatmul.f32.gmra.mxu0 %v220
    %v261 = vpop.f32.mrf.mxu0
    %v262 = vadd.f32 0.0, %v261
    %263 = vdwg.mxu0
    %v265 = vrot.slane %v262, 4
    %v267 = vadd.f32 %v66, %v265
    %v268 = vtanh.pop %v267
    %v270 = vsel %vm79, %v243, 0
    %272 = vmatpush.msra.mxu0 0.0
    %273 = vmatpush.msra.mxu0 0.0
    %274 = vmatpush.msra.mxu0 0.0
    %275 = vmatpush.msra.mxu0 0.0
    %276 = vmatpush.msra.mxu0 0.0
    %277 = vmatpush.msra.mxu0 0.0
    %278 = vmatpush.msra.mxu0 0.0
    %279 = vmatpush.msra.mxu0 0.0
    %280 = vmatpush.msra.mxu0 %v120
    %281 = vmatpush.msra.mxu0 %v119
    %282 = vmatpush.msra.mxu0 %v118
    %283 = vmatpush.msra.mxu0 %v117
    %284 = vmatpush.msra.mxu0 %v116
    %285 = vmatpush.msra.mxu0 %v115
    %286 = vmatpush.msra.mxu0 %v114
    %287 = vmatpush.msra.mxu0 %v113
    %288 = vmatmul.f32.gmra.mxu0 %v270
    %v289 = vpop.f32.mrf.mxu0
    %v290 = vadd.f32 0.0, %v289
    %291 = vdwg.mxu0
    %v293 = vrot.slane %v268, 4
    %v294 = vsel %vm79, %v293, 0
    %296 = vmatpush.msra.mxu0 0.0
    %297 = vmatpush.msra.mxu0 0.0
    %298 = vmatpush.msra.mxu0 0.0
    %299 = vmatpush.msra.mxu0 0.0
    %300 = vmatpush.msra.mxu0 0.0
    %301 = vmatpush.msra.mxu0 0.0
    %302 = vmatpush.msra.mxu0 0.0
    %303 = vmatpush.msra.mxu0 0.0
    %304 = vmatpush.msra.mxu0 %v112
    %305 = vmatpush.msra.mxu0 %v111
    %306 = vmatpush.msra.mxu0 %v110
    %307 = vmatpush.msra.mxu0 %v109
    %308 = vmatpush.msra.mxu0 %v108
    %309 = vmatpush.msra.mxu0 %v107
    %310 = vmatpush.msra.mxu0 %v106
    %311 = vmatpush.msra.mxu0 %v105
    %312 = vmatmul.f32.gmra.mxu0 %v294
    %v313 = vpop.f32.mrf.mxu0
    %v314 = vadd.f32 %v290, %v313
    %315 = vdwg.mxu0
    %v316 = vadd.f32 %v314, %v166
    %v317 = vtanh.pop %v316
    %318 = vmatpush.msra.mxu0 0.0
    %319 = vmatpush.msra.mxu0 0.0
    %320 = vmatpush.msra.mxu0 0.0
    %321 = vmatpush.msra.mxu0 0.0
    %322 = vmatpush.msra.mxu0 0.0
    %323 = vmatpush.msra.mxu0 0.0
    %324 = vmatpush.msra.mxu0 0.0
    %325 = vmatpush.msra.mxu0 0.0
    %326 = vmatpush.msra.mxu0 %v78
    %327 = vmatpush.msra.mxu0 %v77
    %328 = vmatpush.msra.mxu0 %v76
    %329 = vmatpush.msra.mxu0 %v75
    %330 = vmatpush.msra.mxu0 %v74
    %331 = vmatpush.msra.mxu0 %v73
    %332 = vmatpush.msra.mxu0 %v72
    %333 = vmatpush.msra.mxu0 %v71
    %334 = vmatmul.f32.gmra.mxu0 %v294
    %v335 = vpop.f32.mrf.mxu0
    %v336 = vadd.f32 0.0, %v335
    %337 = vdwg.mxu0
    %v339 = vrot.slane %v336, 2
    %v341 = vadd.f32 %v66, %v339
    %v342 = vtanh.pop %v341
    %v344 = vsel %vm79, %v317, 0
    %346 = vmatpush.msra.mxu0 0.0
    %347 = vmatpush.msra.mxu0 0.0
    %348 = vmatpush.msra.mxu0 0.0
    %349 = vmatpush.msra.mxu0 0.0
    %350 = vmatpush.msra.mxu0 0.0
    %351 = vmatpush.msra.mxu0 0.0
    %352 = vmatpush.msra.mxu0 0.0
    %353 = vmatpush.msra.mxu0 0.0
    %354 = vmatpush.msra.mxu0 %v120
    %355 = vmatpush.msra.mxu0 %v119
    %356 = vmatpush.msra.mxu0 %v118
    %357 = vmatpush.msra.mxu0 %v117
    %358 = vmatpush.msra.mxu0 %v116
    %359 = vmatpush.msra.mxu0 %v115
    %360 = vmatpush.msra.mxu0 %v114
    %361 = vmatpush.msra.mxu0 %v113
    %362 = vmatmul.f32.gmra.mxu0 %v344
    %v363 = vpop.f32.mrf.mxu0
    %v364 = vadd.f32 0.0, %v363
    %365 = vdwg.mxu0
    %v367 = vrot.slane %v342, 6
    %v368 = vsel %vm79, %v367, 0
    %370 = vmatpush.msra.mxu0 0.0
    %371 = vmatpush.msra.mxu0 0.0
    %372 = vmatpush.msra.mxu0 0.0
    %373 = vmatpush.msra.mxu0 0.0
    %374 = vmatpush.msra.mxu0 0.0
    %375 = vmatpush.msra.mxu0 0.0
    %376 = vmatpush.msra.mxu0 0.0
    %377 = vmatpush.msra.mxu0 0.0
    %378 = vmatpush.msra.mxu0 %v112
    %379 = vmatpush.msra.mxu0 %v111
    %380 = vmatpush.msra.mxu0 %v110
    %381 = vmatpush.msra.mxu0 %v109
    %382 = vmatpush.msra.mxu0 %v108
    %383 = vmatpush.msra.mxu0 %v107
    %384 = vmatpush.msra.mxu0 %v106
    %385 = vmatpush.msra.mxu0 %v105
    %386 = vmatmul.f32.gmra.mxu0 %v368
    %v387 = vpop.f32.mrf.mxu0
    %v388 = vadd.f32 %v364, %v387
    %389 = vdwg.mxu0
    %v390 = vadd.f32 %v388, %v166
    %v391 = vtanh.pop %v390
    %392 = vmatpush.msra.mxu0 0.0
    %393 = vmatpush.msra.mxu0 0.0
    %394 = vmatpush.msra.mxu0 0.0
    %395 = vmatpush.msra.mxu0 0.0
    %396 = vmatpush.msra.mxu0 0.0
    %397 = vmatpush.msra.mxu0 0.0
    %398 = vmatpush.msra.mxu0 0.0
    %399 = vmatpush.msra.mxu0 0.0
    %400 = vmatpush.msra.mxu0 %v78
    %401 = vmatpush.msra.mxu0 %v77
    %402 = vmatpush.msra.mxu0 %v76
    %403 = vmatpush.msra.mxu0 %v75
    %404 = vmatpush.msra.mxu0 %v74
    %405 = vmatpush.msra.mxu0 %v73
    %406 = vmatpush.msra.mxu0 %v72
    %407 = vmatpush.msra.mxu0 %v71
    %408 = vmatmul.f32.gmra.mxu0 %v368
    %v409 = vpop.f32.mrf.mxu0
    %v410 = vadd.f32 0.0, %v409
    %411 = vdwg.mxu0
    %v412 = vadd.f32 %v69, %v410
    %v413 = vtanh.pop %v412
    %v415 = vsel %vm79, %v391, 0
    %417 = vmatpush.msra.mxu0 0.0
    %418 = vmatpush.msra.mxu0 0.0
    %419 = vmatpush.msra.mxu0 0.0
    %420 = vmatpush.msra.mxu0 0.0
    %421 = vmatpush.msra.mxu0 0.0
    %422 = vmatpush.msra.mxu0 0.0
    %423 = vmatpush.msra.mxu0 0.0
    %424 = vmatpush.msra.mxu0 0.0
    %425 = vmatpush.msra.mxu0 %v120
    %426 = vmatpush.msra.mxu0 %v119
    %427 = vmatpush.msra.mxu0 %v118
    %428 = vmatpush.msra.mxu0 %v117
    %429 = vmatpush.msra.mxu0 %v116
    %430 = vmatpush.msra.mxu0 %v115
    %431 = vmatpush.msra.mxu0 %v114
    %432 = vmatpush.msra.mxu0 %v113
    %433 = vmatmul.f32.gmra.mxu0 %v415
    %v434 = vpop.f32.mrf.mxu0
    %v435 = vadd.f32 0.0, %v434
    %436 = vdwg.mxu0
    %v438 = vsel %vm79, %v413, 0
    %440 = vmatpush.msra.mxu0 0.0
    %441 = vmatpush.msra.mxu0 0.0
    %442 = vmatpush.msra.mxu0 0.0
    %443 = vmatpush.msra.mxu0 0.0
    %444 = vmatpush.msra.mxu0 0.0
    %445 = vmatpush.msra.mxu0 0.0
    %446 = vmatpush.msra.mxu0 0.0
    %447 = vmatpush.msra.mxu0 0.0
    %448 = vmatpush.msra.mxu0 %v112
    %449 = vmatpush.msra.mxu0 %v111
    %450 = vmatpush.msra.mxu0 %v110
    %451 = vmatpush.msra.mxu0 %v109
    %452 = vmatpush.msra.mxu0 %v108
    %453 = vmatpush.msra.mxu0 %v107
    %454 = vmatpush.msra.mxu0 %v106
    %455 = vmatpush.msra.mxu0 %v105
    %456 = vmatmul.f32.gmra.mxu0 %v438
    %v457 = vpop.f32.mrf.mxu0
    %v458 = vadd.f32 %v435, %v457
    %459 = vdwg.mxu0
    %v460 = vadd.f32 %v458, %v166
    %v461 = vtanh.pop %v460
    %462 = vmatpush.msra.mxu0 0.0
    %463 = vmatpush.msra.mxu0 0.0
    %464 = vmatpush.msra.mxu0 0.0
    %465 = vmatpush.msra.mxu0 0.0
    %466 = vmatpush.msra.mxu0 0.0
    %467 = vmatpush.msra.mxu0 0.0
    %468 = vmatpush.msra.mxu0 0.0
    %469 = vmatpush.msra.mxu0 0.0
    %470 = vmatpush.msra.mxu0 %v78
    %471 = vmatpush.msra.mxu0 %v77
    %472 = vmatpush.msra.mxu0 %v76
    %473 = vmatpush.msra.mxu0 %v75
    %474 = vmatpush.msra.mxu0 %v74
    %475 = vmatpush.msra.mxu0 %v73
    %476 = vmatpush.msra.mxu0 %v72
    %477 = vmatpush.msra.mxu0 %v71
    %478 = vmatmul.f32.gmra.mxu0 %v438
    %v479 = vpop.f32.mrf.mxu0
    %v480 = vadd.f32 0.0, %v479
    %481 = vdwg.mxu0
    %v483 = vrot.slane %v480, 6
    %v485 = vadd.f32 %v69, %v483
    %v486 = vtanh.pop %v485
    %v488 = vsel %vm79, %v461, 0
    %490 = vmatpush.msra.mxu0 0.0
    %491 = vmatpush.msra.mxu0 0.0
    %492 = vmatpush.msra.mxu0 0.0
    %493 = vmatpush.msra.mxu0 0.0
    %494 = vmatpush.msra.mxu0 0.0
    %495 = vmatpush.msra.mxu0 0.0
    %496 = vmatpush.msra.mxu0 0.0
    %497 = vmatpush.msra.mxu0 0.0
    %498 = vmatpush.msra.mxu0 %v120
    %499 = vmatpush.msra.mxu0 %v119
    %500 = vmatpush.msra.mxu0 %v118
    %501 = vmatpush.msra.mxu0 %v117
    %502 = vmatpush.msra.mxu0 %v116
    %503 = vmatpush.msra.mxu0 %v115
    %504 = vmatpush.msra.mxu0 %v114
    %505 = vmatpush.msra.mxu0 %v113
    %506 = vmatmul.f32.gmra.mxu0 %v488
    %v507 = vpop.f32.mrf.mxu0
    %v508 = vadd.f32 0.0, %v507
    %509 = vdwg.mxu0
    %v511 = vrot.slane %v486, 2
    %v512 = vsel %vm79, %v511, 0
    %514 = vmatpush.msra.mxu0 0.0
    %515 = vmatpush.msra.mxu0 0.0
    %516 = vmatpush.msra.mxu0 0.0
    %517 = vmatpush.msra.mxu0 0.0
    %518 = vmatpush.msra.mxu0 0.0
    %519 = vmatpush.msra.mxu0 0.0
    %520 = vmatpush.msra.mxu0 0.0
    %521 = vmatpush.msra.mxu0 0.0
    %522 = vmatpush.msra.mxu0 %v112
    %523 = vmatpush.msra.mxu0 %v111
    %524 = vmatpush.msra.mxu0 %v110
    %525 = vmatpush.msra.mxu0 %v109
    %526 = vmatpush.msra.mxu0 %v108
    %527 = vmatpush.msra.mxu0 %v107
    %528 = vmatpush.msra.mxu0 %v106
    %529 = vmatpush.msra.mxu0 %v105
    %530 = vmatmul.f32.gmra.mxu0 %v512
    %v531 = vpop.f32.mrf.mxu0
    %v532 = vadd.f32 %v508, %v531
    %533 = vdwg.mxu0
    %v534 = vadd.f32 %v532, %v166
    %v535 = vtanh.pop %v534
    %536 = vmatpush.msra.mxu0 0.0
    %537 = vmatpush.msra.mxu0 0.0
    %538 = vmatpush.msra.mxu0 0.0
    %539 = vmatpush.msra.mxu0 0.0
    %540 = vmatpush.msra.mxu0 0.0
    %541 = vmatpush.msra.mxu0 0.0
    %542 = vmatpush.msra.mxu0 0.0
    %543 = vmatpush.msra.mxu0 0.0
    %544 = vmatpush.msra.mxu0 %v78
    %545 = vmatpush.msra.mxu0 %v77
    %546 = vmatpush.msra.mxu0 %v76
    %547 = vmatpush.msra.mxu0 %v75
    %548 = vmatpush.msra.mxu0 %v74
    %549 = vmatpush.msra.mxu0 %v73
    %550 = vmatpush.msra.mxu0 %v72
    %551 = vmatpush.msra.mxu0 %v71
    %552 = vmatmul.f32.gmra.mxu0 %v512
    %v553 = vpop.f32.mrf.mxu0
    %v554 = vadd.f32 0.0, %v553
    %555 = vdwg.mxu0
    %v557 = vrot.slane %v554, 4
    %v559 = vadd.f32 %v69, %v557
    %v560 = vtanh.pop %v559
    %v562 = vsel %vm79, %v535, 0
    %564 = vmatpush.msra.mxu0 0.0
    %565 = vmatpush.msra.mxu0 0.0
    %566 = vmatpush.msra.mxu0 0.0
    %567 = vmatpush.msra.mxu0 0.0
    %568 = vmatpush.msra.mxu0 0.0
    %569 = vmatpush.msra.mxu0 0.0
    %570 = vmatpush.msra.mxu0 0.0
    %571 = vmatpush.msra.mxu0 0.0
    %572 = vmatpush.msra.mxu0 %v120
    %573 = vmatpush.msra.mxu0 %v119
    %574 = vmatpush.msra.mxu0 %v118
    %575 = vmatpush.msra.mxu0 %v117
    %576 = vmatpush.msra.mxu0 %v116
    %577 = vmatpush.msra.mxu0 %v115
    %578 = vmatpush.msra.mxu0 %v114
    %579 = vmatpush.msra.mxu0 %v113
    %580 = vmatmul.f32.gmra.mxu0 %v562
    %v581 = vpop.f32.mrf.mxu0
    %v582 = vadd.f32 0.0, %v581
    %583 = vdwg.mxu0
    %v585 = vrot.slane %v560, 4
    %v586 = vsel %vm79, %v585, 0
    %588 = vmatpush.msra.mxu0 0.0
    %589 = vmatpush.msra.mxu0 0.0
    %590 = vmatpush.msra.mxu0 0.0
    %591 = vmatpush.msra.mxu0 0.0
    %592 = vmatpush.msra.mxu0 0.0
    %593 = vmatpush.msra.mxu0 0.0
    %594 = vmatpush.msra.mxu0 0.0
    %595 = vmatpush.msra.mxu0 0.0
    %596 = vmatpush.msra.mxu0 %v112
    %597 = vmatpush.msra.mxu0 %v111
    %598 = vmatpush.msra.mxu0 %v110
    %599 = vmatpush.msra.mxu0 %v109
    %600 = vmatpush.msra.mxu0 %v108
    %601 = vmatpush.msra.mxu0 %v107
    %602 = vmatpush.msra.mxu0 %v106
    %603 = vmatpush.msra.mxu0 %v105
    %604 = vmatmul.f32.gmra.mxu0 %v586
    %v605 = vpop.f32.mrf.mxu0
    %v606 = vadd.f32 %v582, %v605
    %607 = vdwg.mxu0
    %v608 = vadd.f32 %v606, %v166
    %v609 = vtanh.pop %v608
    %610 = vmatpush.msra.mxu0 0.0
    %611 = vmatpush.msra.mxu0 0.0
    %612 = vmatpush.msra.mxu0 0.0
    %613 = vmatpush.msra.mxu0 0.0
    %614 = vmatpush.msra.mxu0 0.0
    %615 = vmatpush.msra.mxu0 0.0
    %616 = vmatpush.msra.mxu0 0.0
    %617 = vmatpush.msra.mxu0 0.0
    %618 = vmatpush.msra.mxu0 %v78
    %619 = vmatpush.msra.mxu0 %v77
    %620 = vmatpush.msra.mxu0 %v76
    %621 = vmatpush.msra.mxu0 %v75
    %622 = vmatpush.msra.mxu0 %v74
    %623 = vmatpush.msra.mxu0 %v73
    %624 = vmatpush.msra.mxu0 %v72
    %625 = vmatpush.msra.mxu0 %v71
    %626 = vmatmul.f32.gmra.mxu0 %v586
    %v627 = vpop.f32.mrf.mxu0
    %v628 = vadd.f32 0.0, %v627
    %629 = vdwg.mxu0
    %v631 = vrot.slane %v628, 2
    %v633 = vadd.f32 %v69, %v631
    %v634 = vtanh.pop %v633
    %v636 = vsel %vm79, %v609, 0
    %638 = vmatpush.msra.mxu0 0.0
    %639 = vmatpush.msra.mxu0 0.0
    %640 = vmatpush.msra.mxu0 0.0
    %641 = vmatpush.msra.mxu0 0.0
    %642 = vmatpush.msra.mxu0 0.0
    %643 = vmatpush.msra.mxu0 0.0
    %644 = vmatpush.msra.mxu0 0.0
    %645 = vmatpush.msra.mxu0 0.0
    %646 = vmatpush.msra.mxu0 %v120
    %647 = vmatpush.msra.mxu0 %v119
    %648 = vmatpush.msra.mxu0 %v118
    %649 = vmatpush.msra.mxu0 %v117
    %650 = vmatpush.msra.mxu0 %v116
    %651 = vmatpush.msra.mxu0 %v115
    %652 = vmatpush.msra.mxu0 %v114
    %653 = vmatpush.msra.mxu0 %v113
    %654 = vmatmul.f32.gmra.mxu0 %v636
    %v655 = vpop.f32.mrf.mxu0
    %v656 = vadd.f32 0.0, %v655
    %657 = vdwg.mxu0
    %v659 = vrot.slane %v634, 6
    %v660 = vsel %vm79, %v659, 0
    %662 = vmatpush.msra.mxu0 0.0
    %663 = vmatpush.msra.mxu0 0.0
    %664 = vmatpush.msra.mxu0 0.0
    %665 = vmatpush.msra.mxu0 0.0
    %666 = vmatpush.msra.mxu0 0.0
    %667 = vmatpush.msra.mxu0 0.0
    %668 = vmatpush.msra.mxu0 0.0
    %669 = vmatpush.msra.mxu0 0.0
    %670 = vmatpush.msra.mxu0 %v112
    %671 = vmatpush.msra.mxu0 %v111
    %672 = vmatpush.msra.mxu0 %v110
    %673 = vmatpush.msra.mxu0 %v109
    %674 = vmatpush.msra.mxu0 %v108
    %675 = vmatpush.msra.mxu0 %v107
    %676 = vmatpush.msra.mxu0 %v106
    %677 = vmatpush.msra.mxu0 %v105
    %678 = vmatmul.f32.gmra.mxu0 %v660
    %v679 = vpop.f32.mrf.mxu0
    %v680 = vadd.f32 %v656, %v679
    %681 = vdwg.mxu0
    %v682 = vadd.f32 %v680, %v166
    %v683 = vtanh.pop %v682
    %v684 = vld [vmem:[%s7] sm:$0xff]
    %v685 = vld [vmem:[%s7 + $0x8] sm:$0xff]
    %v686 = vld [vmem:[%s7 + $0x10] sm:$0xff]
    %v687 = vld [vmem:[%s7 + $0x18] sm:$0xff]
    %v688 = vld [vmem:[%s7 + $0x20] sm:$0xff]
    %v689 = vld [vmem:[%s7 + $0x28] sm:$0xff]
    %v690 = vld [vmem:[%s7 + $0x30] sm:$0xff]
    %v691 = vld [vmem:[%s7 + $0x38] sm:$0xff]
    %v692 = vld [vmem:[%s8] sm:$0x1]
    %v694 = vperm.slane %v692, 0
    %v697 = vsel %vm79, %v683, 0
    %699 = vmatpush.msra.mxu0 0.0
    %700 = vmatpush.msra.mxu0 0.0
    %701 = vmatpush.msra.mxu0 0.0
    %702 = vmatpush.msra.mxu0 0.0
    %703 = vmatpush.msra.mxu0 0.0
    %704 = vmatpush.msra.mxu0 0.0
    %705 = vmatpush.msra.mxu0 0.0
    %706 = vmatpush.msra.mxu0 0.0
    %707 = vmatpush.msra.mxu0 %v691
    %708 = vmatpush.msra.mxu0 %v690
    %709 = vmatpush.msra.mxu0 %v689
    %710 = vmatpush.msra.mxu0 %v688
    %711 = vmatpush.msra.mxu0 %v687
    %712 = vmatpush.msra.mxu0 %v686
    %713 = vmatpush.msra.mxu0 %v685
    %714 = vmatpush.msra.mxu0 %v684
    %715 = vmatmul.f32.gmra.mxu0 %v697
    %v716 = vpop.f32.mrf.mxu0
    %v717 = vadd.f32 %v694, %v716
    %718 = vdwg.mxu0
    %719 = vst [vmem:[#allocation2] sm:$0x3] %v717
    // Predicated region
    $region38: #{rnn_forward.1} parent=1 // pred_check
      _
    $region39: #{rnn_forward.1} parent=1 // pred_check_branch
      %721 = sbr.rel (0) target = $region41
    $region40: #{rnn_forward.1} parent=1 // pred_region
      %723 = vsyncadd [#allocation3], 0
      %s725 = sshll.u32 [#allocation2], 4
      %s726 = int_to_ptr.vmem [resolvable:$true] %s725
      %s727 = sshll.u32 %s9, 4
      %s728 = int_to_ptr.hbm [resolvable:$true] %s727
      %730 = dma.vmem_to_hbm [thread:$0]  %s726, 32, %s728, [#allocation3]
    $region41: #{rnn_forward.1} parent=1 // pred_fallthru
      _
    // Predicated region
    $region42: #{rnn_forward.1} parent=1 // pred_check
      _
    $region43: #{rnn_forward.1} parent=1 // pred_check_branch
      %732 = sbr.rel (0) target = $region45
    $region44: #{rnn_forward.1} parent=1 // pred_region
      %734 = dma.done [#allocation3], 32
    $region45: #{rnn_forward.1} parent=1 // pred_fallthru
      _
    %735 = vsyncpa [#allocation3], 1

</llo_original>
